<compile_context>
chip_gen: v7x
topology: tpu7x:2x2x1
jax: 0.10.0
libtpu: 0.0.40
codegen_flags: <defaults>
</compile_context>

<pallas_src>
import functools

import jax
import jax.numpy as jnp
from jax import lax
from jax.experimental import pallas as pl
from jax.experimental.pallas import tpu as pltpu


_NEG_FILL = -1e30  # finite "minus infinity" for padded class lanes


def _round_up(x, m):
    return ((x + m - 1) // m) * m


def _kl_div_kernel(labels_ref, logits_ref, out_ref, m_sc, l_sc, p_sc, *, tc):
    """Process one (TB, TC) logits tile.

    Scratch (all (TB, 1) f32, persistent across the C grid axis):
      m_sc : running row max
      l_sc : running row sum of exp(x - m)
      p_sc : running picked logit x[row, label_row]
    At the last C tile writes per-row loss = m + log(l) - picked.
    """
    j = pl.program_id(1)

    @pl.when(j == 0)
    def _():
        m_sc[...] = jnp.full_like(m_sc, -jnp.inf)
        l_sc[...] = jnp.zeros_like(l_sc)
        p_sc[...] = jnp.zeros_like(p_sc)

    x = logits_ref[...].astype(jnp.float32)   # (TB, TC), compute in f32
    labels = labels_ref[...]                  # (TB, 1) int32

    # Online (streaming) logsumexp over the class axis.
    m_old = m_sc[...]
    m_new = jnp.maximum(m_old, jnp.max(x, axis=-1, keepdims=True))
    l_sc[...] = (l_sc[...] * jnp.exp(m_old - m_new)
                 + jnp.sum(jnp.exp(x - m_new), axis=-1, keepdims=True))
    m_sc[...] = m_new

    # "Gather" x[row, label]: lane compare + select + reduce (VPU/XLU path,
    # deliberately NOT a one-hot matmul). Labels outside this C tile (or
    # out-of-range labels) match no lane and contribute 0.
    col = lax.broadcasted_iota(jnp.int32, x.shape, 1) + j * tc
    p_sc[...] += jnp.sum(jnp.where(col == labels, x, 0.0),
                         axis=-1, keepdims=True)

    @pl.when(j == pl.num_programs(1) - 1)
    def _():
        out_ref[...] = m_sc[...] + jnp.log(l_sc[...]) - p_sc[...]


def kl_divergence_loss(logits: jax.Array, labels: jax.Array,
                       *, tb_max: int = 256, tc_max: int = 2048) -> jax.Array:
    """nn.KLDivLoss('batchmean')(log_softmax(logits), one_hot(labels)).

    logits: (B, C) float (f32 or bf16; kept in its HBM dtype, cast per block)
    labels: (B,)   int
    Returns a scalar f32 loss.
    """
    assert logits.ndim == 2 and labels.ndim == 1
    B, C = logits.shape

    # ---- class-dim tiling -------------------------------------------------
    if C <= tc_max:
        tc, c_pad = C, C                      # single full-width tile, no pad
    else:
        tc = tc_max                           # multiple of 128
        c_pad = _round_up(C, tc)

    # ---- batch-dim tiling (sublane aligned) --------------------------------
    tb = min(_round_up(max(B, 1), 8), tb_max)
    b_pad = _round_up(B, tb)

    # ---- padding (padded class lanes are value-masked; padded rows sliced) -
    x = logits
    if c_pad > C:
        x = jnp.pad(x, ((0, 0), (0, c_pad - C)), constant_values=_NEG_FILL)
    if b_pad > B:
        x = jnp.pad(x, ((0, b_pad - B), (0, 0)))

    labels2d = labels.astype(jnp.int32).reshape(-1, 1)
    if b_pad > B:
        labels2d = jnp.pad(labels2d, ((0, b_pad - B), (0, 0)))

    grid = (b_pad // tb, c_pad // tc)

    per_row = pl.pallas_call(
        functools.partial(_kl_div_kernel, tc=tc),
        out_shape=jax.ShapeDtypeStruct((b_pad, 1), jnp.float32),
        grid_spec=pltpu.PrefetchScalarGridSpec(
            num_scalar_prefetch=0,
            grid=grid,
            in_specs=[
                pl.BlockSpec((tb, 1), lambda i, j: (i, 0)),    # labels
                pl.BlockSpec((tb, tc), lambda i, j: (i, j)),   # logits
            ],
            out_specs=pl.BlockSpec((tb, 1), lambda i, j: (i, 0)),
            scratch_shapes=[pltpu.VMEM((tb, 1), jnp.float32)] * 3,
        ),
        compiler_params=pltpu.CompilerParams(
            dimension_semantics=("parallel", "arbitrary")),
    )(labels2d, x)

    # Per-row NLL -> 'batchmean': drop padded rows, sum, divide by true B.
    return jnp.sum(per_row[:B, 0]) / jnp.float32(B)


def _reference(logits, labels):
    log_probs = jax.nn.log_softmax(logits.astype(jnp.float32), axis=1)
    return -jnp.mean(jnp.take_along_axis(log_probs, labels[:, None], axis=1))


if __name__ == "__main__":
    key = jax.random.PRNGKey(0)
    k1, k2, k3, k4 = jax.random.split(key, 4)

    # Main case: num_classes = 16, batch = 8 (matches the module's intent).
    B, C = 8, 16
    logits = jax.random.normal(k1, (B, C), dtype=jnp.float32)
    labels = jax.random.randint(k2, (B,), 0, C, dtype=jnp.int32)
    loss = kl_divergence_loss(logits, labels)
    jax.block_until_ready(loss)
    ref = _reference(logits, labels)
    assert jnp.allclose(loss, ref, rtol=1e-5, atol=1e-5), (loss, ref)

    # Padding paths: ragged batch (row padding) + streamed / padded class dim
    # (forces multi-tile online logsumexp with tc_max=128).
    B2, C2 = 5, 300
    logits2 = jax.random.normal(k3, (B2, C2), dtype=jnp.float32)
    labels2 = jax.random.randint(k4, (B2,), 0, C2, dtype=jnp.int32)
    loss2 = kl_divergence_loss(logits2, labels2, tc_max=128)
    jax.block_until_ready(loss2)
    ref2 = _reference(logits2, labels2)
    assert jnp.allclose(loss2, ref2, rtol=1e-5, atol=1e-5), (loss2, ref2)

    print("KERNEL_OK")
</pallas_src>

<mosaic_0001>
module attributes {stable_mosaic.version = 11 : i64} {
  func.func @_kl_div_kernel(%arg0: i32, %arg1: i32, %arg2: memref<8x1xi32, #tpu.memory_space<vmem>>, %arg3: memref<8x16xf32, #tpu.memory_space<vmem>>, %arg4: memref<8x1xf32, #tpu.memory_space<vmem>>, %arg5: memref<8x1xf32, #tpu.memory_space<vmem>>, %arg6: memref<8x1xf32, #tpu.memory_space<vmem>>, %arg7: memref<8x1xf32, #tpu.memory_space<vmem>>) attributes {dimension_semantics = [#tpu.dimension_semantics<parallel>, #tpu.dimension_semantics<arbitrary>], iteration_bounds = array<i64: 1, 1>, scalar_prefetch = 0 : i64, scratch_operands = 3 : i64, tpu.core_type = #tpu.core_type<tc>, window_params = [{transform_indices = @transform_0, window_bounds = array<i64: 8, 1>}, {transform_indices = @transform_1, window_bounds = array<i64: 8, 16>}, {transform_indices = @transform_2, window_bounds = array<i64: 8, 1>}]} {
    %c0_i32 = arith.constant 0 : i32
    %0 = arith.cmpi eq, %arg1, %c0_i32 : i32
    %1 = arith.extui %0 : i1 to i32
    %c0_i32_0 = arith.constant 0 : i32
    %2 = arith.cmpi ne, %1, %c0_i32_0 : i32
    scf.if %2 {
      %cst_21 = arith.constant 0xFF800000 : f32
      %37 = vector.broadcast %cst_21 : f32 to vector<8x1xf32>
      %c0_22 = arith.constant 0 : index
      %c0_23 = arith.constant 0 : index
      %38 = vector.load %arg5[%c0_22, %c0_23] : memref<8x1xf32, #tpu.memory_space<vmem>>, vector<8x1xf32>
      tpu.vector_store %arg5[%c0_22, %c0_23], %37 {strides = array<i32>} : memref<8x1xf32, #tpu.memory_space<vmem>>, vector<8x1xf32>,
      %cst_24 = arith.constant 0.000000e+00 : f32
      %39 = vector.broadcast %cst_24 : f32 to vector<8x1xf32>
      %c0_25 = arith.constant 0 : index
      %c0_26 = arith.constant 0 : index
      %40 = vector.load %arg6[%c0_25, %c0_26] : memref<8x1xf32, #tpu.memory_space<vmem>>, vector<8x1xf32>
      tpu.vector_store %arg6[%c0_25, %c0_26], %39 {strides = array<i32>} : memref<8x1xf32, #tpu.memory_space<vmem>>, vector<8x1xf32>,
      %cst_27 = arith.constant 0.000000e+00 : f32
      %41 = vector.broadcast %cst_27 : f32 to vector<8x1xf32>
      %c0_28 = arith.constant 0 : index
      %c0_29 = arith.constant 0 : index
      %42 = vector.load %arg7[%c0_28, %c0_29] : memref<8x1xf32, #tpu.memory_space<vmem>>, vector<8x1xf32>
      tpu.vector_store %arg7[%c0_28, %c0_29], %41 {strides = array<i32>} : memref<8x1xf32, #tpu.memory_space<vmem>>, vector<8x1xf32>,
    } else {
    }
    %c0 = arith.constant 0 : index
    %c0_1 = arith.constant 0 : index
    %3 = vector.load %arg3[%c0, %c0_1] : memref<8x16xf32, #tpu.memory_space<vmem>>, vector<8x16xf32>
    %c0_2 = arith.constant 0 : index
    %c0_3 = arith.constant 0 : index
    %4 = vector.load %arg2[%c0_2, %c0_3] : memref<8x1xi32, #tpu.memory_space<vmem>>, vector<8x1xi32>
    %c0_4 = arith.constant 0 : index
    %c0_5 = arith.constant 0 : index
    %5 = vector.load %arg5[%c0_4, %c0_5] : memref<8x1xf32, #tpu.memory_space<vmem>>, vector<8x1xf32>
    %cst = arith.constant dense<0xFF800000> : vector<8xf32>
    %6 = vector.multi_reduction <maximumf>, %3, %cst [1] : vector<8x16xf32> to vector<8xf32>
    %7 = vector.shape_cast %6 : vector<8xf32> to vector<8x1xf32>
    %8 = arith.maximumf %5, %7 : vector<8x1xf32>
    %c0_6 = arith.constant 0 : index
    %c0_7 = arith.constant 0 : index
    %9 = vector.load %arg6[%c0_6, %c0_7] : memref<8x1xf32, #tpu.memory_space<vmem>>, vector<8x1xf32>
    %10 = arith.subf %5, %8 : vector<8x1xf32>
    %11 = math.exp %10 : vector<8x1xf32>
    %12 = arith.mulf %9, %11 : vector<8x1xf32>
    %13 = vector.broadcast %8 : vector<8x1xf32> to vector<8x16xf32>
    %14 = arith.subf %3, %13 : vector<8x16xf32>
    %15 = math.exp %14 : vector<8x16xf32>
    %cst_8 = arith.constant dense<0.000000e+00> : vector<8xf32>
    %16 = vector.multi_reduction <add>, %15, %cst_8 [1] : vector<8x16xf32> to vector<8xf32>
    %17 = vector.shape_cast %16 : vector<8xf32> to vector<8x1xf32>
    %18 = arith.addf %12, %17 : vector<8x1xf32>
    %c0_9 = arith.constant 0 : index
    %c0_10 = arith.constant 0 : index
    %19 = vector.load %arg6[%c0_9, %c0_10] : memref<8x1xf32, #tpu.memory_space<vmem>>, vector<8x1xf32>
    tpu.vector_store %arg6[%c0_9, %c0_10], %18 {strides = array<i32>} : memref<8x1xf32, #tpu.memory_space<vmem>>, vector<8x1xf32>,
    %c0_11 = arith.constant 0 : index
    %c0_12 = arith.constant 0 : index
    %20 = vector.load %arg5[%c0_11, %c0_12] : memref<8x1xf32, #tpu.memory_space<vmem>>, vector<8x1xf32>
    tpu.vector_store %arg5[%c0_11, %c0_12], %8 {strides = array<i32>} : memref<8x1xf32, #tpu.memory_space<vmem>>, vector<8x1xf32>,
    %21 = tpu.iota {dimensions = array<i32: 1>} : vector<8x16xi32>
    %c16_i32 = arith.constant 16 : i32
    %22 = arith.muli %arg1, %c16_i32 : i32
    %23 = vector.broadcast %22 : i32 to vector<8x16xi32>
    %24 = arith.addi %21, %23 : vector<8x16xi32>
    %c0_13 = arith.constant 0 : index
    %c0_14 = arith.constant 0 : index
    %25 = vector.load %arg7[%c0_13, %c0_14] : memref<8x1xf32, #tpu.memory_space<vmem>>, vector<8x1xf32>
    %26 = vector.broadcast %4 : vector<8x1xi32> to vector<8x16xi32>
    %27 = arith.cmpi eq, %24, %26 : vector<8x16xi32>
    %cst_15 = arith.constant 0.000000e+00 : f32
    %28 = vector.broadcast %cst_15 : f32 to vector<8x16xf32>
    %29 = arith.select %27, %3, %28 : vector<8x16xi1>, vector<8x16xf32>
    %cst_16 = arith.constant dense<0.000000e+00> : vector<8xf32>
    %30 = vector.multi_reduction <add>, %29, %cst_16 [1] : vector<8x16xf32> to vector<8xf32>
    %31 = vector.shape_cast %30 : vector<8xf32> to vector<8x1xf32>
    %32 = arith.addf %25, %31 : vector<8x1xf32>
    %c0_17 = arith.constant 0 : index
    %c0_18 = arith.constant 0 : index
    %33 = vector.load %arg7[%c0_17, %c0_18] : memref<8x1xf32, #tpu.memory_space<vmem>>, vector<8x1xf32>
    tpu.vector_store %arg7[%c0_17, %c0_18], %32 {strides = array<i32>} : memref<8x1xf32, #tpu.memory_space<vmem>>, vector<8x1xf32>,
    %c0_i32_19 = arith.constant 0 : i32
    %34 = arith.cmpi eq, %arg1, %c0_i32_19 : i32
    %35 = arith.extui %34 : i1 to i32
    %c0_i32_20 = arith.constant 0 : i32
    %36 = arith.cmpi ne, %35, %c0_i32_20 : i32
    scf.if %36 {
      %c0_21 = arith.constant 0 : index
      %c0_22 = arith.constant 0 : index
      %37 = vector.load %arg5[%c0_21, %c0_22] : memref<8x1xf32, #tpu.memory_space<vmem>>, vector<8x1xf32>
      %c0_23 = arith.constant 0 : index
      %c0_24 = arith.constant 0 : index
      %38 = vector.load %arg6[%c0_23, %c0_24] : memref<8x1xf32, #tpu.memory_space<vmem>>, vector<8x1xf32>
      %39 = math.log %38 : vector<8x1xf32>
      %40 = arith.addf %37, %39 : vector<8x1xf32>
      %c0_25 = arith.constant 0 : index
      %c0_26 = arith.constant 0 : index
      %41 = vector.load %arg7[%c0_25, %c0_26] : memref<8x1xf32, #tpu.memory_space<vmem>>, vector<8x1xf32>
      %42 = arith.subf %40, %41 : vector<8x1xf32>
      %c0_27 = arith.constant 0 : index
      %c0_28 = arith.constant 0 : index
      %43 = vector.load %arg4[%c0_27, %c0_28] : memref<8x1xf32, #tpu.memory_space<vmem>>, vector<8x1xf32>
      tpu.vector_store %arg4[%c0_27, %c0_28], %42 {strides = array<i32>} : memref<8x1xf32, #tpu.memory_space<vmem>>, vector<8x1xf32>,
    } else {
    }
    return
  }
  func.func @transform_0(%arg0: i32, %arg1: i32) -> (i32, i32) {
    %c0_i32 = arith.constant 0 : i32
    %c0_i32_0 = arith.constant 0 : i32
    return %arg0, %c0_i32 : i32, i32
  }
  func.func @transform_1(%arg0: i32, %arg1: i32) -> (i32, i32) {
    %c0_i32 = arith.constant 0 : i32
    return %arg0, %arg1 : i32, i32
  }
  func.func @transform_2(%arg0: i32, %arg1: i32) -> (i32, i32) {
    %c0_i32 = arith.constant 0 : i32
    %c0_i32_0 = arith.constant 0 : i32
    return %arg0, %c0_i32 : i32, i32
  }
}

</mosaic_0001>

<llo_original>
// kernel: tpu_custom_call.1
$region0: #{tpu_custom_call.1}
  #allocation0 [shape = 'u32[]', space=smem, size = 0x4, offset = 0x4, fixed_abs, tag = 'smem constant byte address 0x4 - core index']
  #allocation1 [shape = 'u32[144,128]{1,0:T(1,128)}', space=vmem, size = 0x12000, scoped, tag = 'internal scratch']
  #allocation2 [shape = 'f32[8,1]{1,0:T(8,128)}', space=vmem, size = 0x1000, scoped, tag = 'scratch operand']
  #allocation3 [shape = 'f32[8,1]{1,0:T(8,128)}', space=vmem, size = 0x1000, scoped, tag = 'scratch operand']
  #allocation4 [shape = 'f32[8,1]{1,0:T(8,128)}', space=vmem, size = 0x1000, scoped, tag = 'scratch operand']
  %s0 = inlined_call_operand.vmem [shape: s32[8,1], index: 0, kind: input, shape index: {}]
  %s1 = inlined_call_operand.vmem [shape: f32[8,16], index: 1, kind: input, shape index: {}]
  %s2 = inlined_call_operand.vmem [shape: f32[8,1], index: 2, kind: output, shape index: {}]
  %s3 = sld [smem:[#allocation0]]
  $region26: #{tpu_custom_call.1} parent=0
    _
  %s5 = ssub.s32 1, %s3
  %s6 = scalar_select 0, %s5, %s3
  // Predicated region
  $region2: #{tpu_custom_call.1} parent=0 // pred_check
    _
  $region3: #{tpu_custom_call.1} parent=0 // pred_check_branch
    %8 = sbr.rel (0) target = $region5
  $region4: #{tpu_custom_call.1} parent=0 // pred_region
    _
  $region5: #{tpu_custom_call.1} parent=0 // pred_fallthru
    _
  // Predicated region
  $region6: #{tpu_custom_call.1} parent=0 // pred_check
    _
  $region7: #{tpu_custom_call.1} parent=0 // pred_check_branch
    %10 = sbr.rel (0) target = $region9
  $region8: #{tpu_custom_call.1} parent=0 // pred_region
    _
  $region9: #{tpu_custom_call.1} parent=0 // pred_fallthru
    _
  %p11 = scmp.eq.s32.totalorder 0, 0
  // Predicated region
  $region10: #{tpu_custom_call.1} parent=0 // pred_check
    %p12 = pneg %p11
  $region11: #{tpu_custom_call.1} parent=0 // pred_check_branch
    %14 = sbr.rel (%p12) target = $region13
  $region12: #{tpu_custom_call.1} parent=0 // pred_region
    %vm15 = vcmask 7168
    %16 = vst.msk [vmem:[#allocation2] sm:$0xff] %vm15, -inf
    %17 = vst.msk [vmem:[#allocation3] sm:$0xff] %vm15, 0.0
    %18 = vst.msk [vmem:[#allocation4] sm:$0xff] %vm15, 0.0
  $region13: #{tpu_custom_call.1} parent=0 // pred_fallthru
    _
  %v19 = vld [vmem:[%s1] sm:$0xff]
  %v20 = vld [vmem:[%s0] sm:$0xff]
  %v21 = vld [vmem:[#allocation2] sm:$0xff]
  %vm22 = vcmask 130048
  %v23 = vsel %vm22, %v19, -inf
  %24 = vmax.xlane.f32.xlu0 %v23
  %v25 = vpop.xlane.xlu0 %24
  %v26 = vmax.f32 %v21, %v25
  %v27 = vld [vmem:[#allocation3] sm:$0xff]
  %v28 = vsub.f32 %v21, %v26
  %v29 = vmul.f32 %v28, 1.442695
  %v30 = vpow.pop %v29
  %v31 = vmul.f32 %v27, %v30
  %33 = vset.pattern.permute.xlu0 0
  %34 = vperm.xlu0 %33, %v26
  %v35 = vpop.permute.xlu0 %34
  %v37 = vsub.f32 %v19, %v35
  %v38 = vmul.f32 %v37, 1.442695
  %v39 = vpow.pop %v38
  %v40 = vsel %vm22, %v39, 0.0
  %41 = vadd.xlane.f32.xlu0 %v40
  %v42 = vpop.xlane.xlu0 %41
  %v43 = vadd.f32 %v31, %v42
  %vm44 = vcmask 7168
  %45 = vst.msk [vmem:[#allocation3] sm:$0xff] %vm44, %v43
  %46 = vst.msk [vmem:[#allocation2] sm:$0xff] %vm44, %v26
  %v47 = vlaneseq
  %v48 = vand.u32 %v47, 127
  %s49 = smul.u32 0, 16
  %v50 = vstv %s49
  %v51 = vadd.s32 %v48, %v50
  %v52 = vld [vmem:[#allocation4] sm:$0xff]
  %53 = vset.pattern.permute.xlu0 0
  %54 = vperm.xlu0 %53, %v20
  %v55 = vpop.permute.xlu0 %54
  %vm56 = vcmp.eq.s32.totalorder %v51, %v55
  %v57 = vsel %vm56, %v19, 0.0
  %v58 = vsel %vm22, %v57, 0.0
  %59 = vadd.xlane.f32.xlu0 %v58
  %v60 = vpop.xlane.xlu0 %59
  %v61 = vadd.f32 %v52, %v60
  %62 = vst.msk [vmem:[#allocation4] sm:$0xff] %vm44, %v61
  // Predicated region
  $region14: #{tpu_custom_call.1} parent=0 // pred_check
    %p63 = pneg %p11
  $region15: #{tpu_custom_call.1} parent=0 // pred_check_branch
    %65 = sbr.rel (%p63) target = $region17
  $region16: #{tpu_custom_call.1} parent=0 // pred_region
    %v66 = vld [vmem:[#allocation2] sm:$0xff]
    %v67 = vld [vmem:[#allocation3] sm:$0xff]
    %v68 = vlog2.pop %v67
    %v69 = vmul.f32 %v68, 0.6931472
    %v70 = vadd.f32 %v66, %v69
    %v71 = vld [vmem:[#allocation4] sm:$0xff]
    %v72 = vsub.f32 %v70, %v71
    %73 = vst.msk [vmem:[%s2] sm:$0xff] %vm44, %v72
  $region17: #{tpu_custom_call.1} parent=0 // pred_fallthru
    _
  // Predicated region
  $region18: #{tpu_custom_call.1} parent=0 // pred_check
    _
  $region19: #{tpu_custom_call.1} parent=0 // pred_check_branch
    %75 = sbr.rel (0) target = $region21
  $region20: #{tpu_custom_call.1} parent=0 // pred_region
    _
  $region21: #{tpu_custom_call.1} parent=0 // pred_fallthru
    _
  // Predicated region
  $region22: #{tpu_custom_call.1} parent=0 // pred_check
    _
  $region23: #{tpu_custom_call.1} parent=0 // pred_check_branch
    %77 = sbr.rel (0) target = $region25
  $region24: #{tpu_custom_call.1} parent=0 // pred_region
    _
  $region25: #{tpu_custom_call.1} parent=0 // pred_fallthru
    _

</llo_original>
